<compile_context>
chip_gen: v6e
topology: v6e:2x2x1
jax: 0.10.0
libtpu: 0.0.40
codegen_flags: <defaults>
</compile_context>

<pallas_src>
import functools

import jax
import jax.numpy as jnp
import numpy as np
from jax.experimental import pallas as pl
from jax.experimental.pallas import tpu as pltpu

TEMPERATURE = 0.01
NEG_INF = -1e30  # finite "minus infinity" for masked (clipped / stale) negative columns


def _loss_kernel(qg_ref, dpos_ref, dneg_ref, out_ref,
                 sp_sc, acc_sc, m_sc, s_sc, diag_sc, rev_sc,
                 *, inv_t, valid_m, n_queries):
    mt = pl.program_id(0)                 # negatives batch-tile index
    f = pl.program_id(1)                  # field index (innermost grid axis)
    num_f = pl.num_programs(1)
    tile_b, _, n_neg, emb = dneg_ref.shape
    tile_cols = tile_b * n_neg

    # ---------- one-time init at the very first grid step ----------
    @pl.when(jnp.logical_and(mt == 0, f == 0))
    def _init():
        m_sc[...] = jnp.full_like(m_sc, -jnp.inf)
        s_sc[...] = jnp.zeros_like(s_sc)
        sp_sc[...] = jnp.zeros_like(sp_sc)
        diag_sc[...] = jnp.zeros_like(diag_sc)

    qg_f = qg_ref[0]                       # [Bq, E]  gate(q)[:, f] * q  (doc dtype)

    # ---------- positives: accumulate field f (runs only during the first m-tile) ----------
    @pl.when(mt == 0)
    def _pos():
        dpos_f = dpos_ref[0]               # [B, E]
        sp_sc[...] += jax.lax.dot_general(          # NT form: contract E on both
            qg_f, dpos_f, (((1,), (1,)), ((), ())),
            preferred_element_type=jnp.float32)
        diag_sc[...] += jnp.sum(
            qg_f.astype(jnp.float32) * dpos_f.astype(jnp.float32),
            axis=1, keepdims=True)

    # ---------- negatives: accumulate field f for this batch tile ----------
    @pl.when(f == 0)
    def _zero_acc():
        acc_sc[...] = jnp.zeros_like(acc_sc)

    # Natural-layout slab d_neg[b0:b0+tile_b, f, :, :] -> [tile_b*N, E]
    # (layout-preserving collapse when N is sublane-aligned; N % 8 == 0 for f32).
    slab = dneg_ref[...].reshape(tile_cols, emb)
    acc_sc[...] += jax.lax.dot_general(
        qg_f, slab, (((1,), (1,)), ((), ())),
        preferred_element_type=jnp.float32)

    # ---------- all fields in: online LSE update for this tile ----------
    @pl.when(f == num_f - 1)
    def _lse():
        sn = acc_sc[...] * inv_t
        # Mask columns past the true negatives count (boundary DMA is clipped by Pallas,
        # so the VMEM tail holds stale data -> force it to NEG_INF before it is consumed).
        col = mt * tile_cols + jax.lax.broadcasted_iota(jnp.int32, (1, tile_cols), 1)
        sn = jnp.where(col < valid_m, sn, NEG_INF)
        t_max = jnp.max(sn, axis=1, keepdims=True)
        m_new = jnp.maximum(m_sc[...], t_max)
        s_sc[...] = (s_sc[...] * jnp.exp(m_sc[...] - m_new)
                     + jnp.sum(jnp.exp(sn - m_new), axis=1, keepdims=True))
        m_sc[...] = m_new

    # ---------- positives finalize (once): scale, fold into forward LSE, reverse NLL ----------
    @pl.when(jnp.logical_and(mt == 0, f == num_f - 1))
    def _pos_done():
        sp = sp_sc[...] * inv_t            # [Bq, B]
        diag = diag_sc[...] * inv_t        # [Bq, 1]
        diag_sc[...] = diag
        # fold the positive block into the forward online LSE (order-invariant)
        p_max = jnp.max(sp, axis=1, keepdims=True)
        m_new = jnp.maximum(m_sc[...], p_max)
        s_sc[...] = (s_sc[...] * jnp.exp(m_sc[...] - m_new)
                     + jnp.sum(jnp.exp(sp - m_new), axis=1, keepdims=True))
        m_sc[...] = m_new
        # reverse direction: rev_scores == scores_pos.T -> log-softmax over columns of sp
        mr = jnp.max(sp, axis=0, keepdims=True)                         # [1, B]
        lse_rev = mr + jnp.log(jnp.sum(jnp.exp(sp - mr), axis=0, keepdims=True))
        rev_sc[...] = -(jnp.sum(diag, axis=0, keepdims=True)
                        - jnp.sum(lse_rev, axis=1, keepdims=True)) / n_queries

    # ---------- final output on the very last grid step ----------
    @pl.when(jnp.logical_and(mt == pl.num_programs(0) - 1, f == num_f - 1))
    def _done():
        lse_fwd = m_sc[...] + jnp.log(s_sc[...])                        # [Bq, 1]
        nll_fwd = -jnp.sum(diag_sc[...] - lse_fwd, axis=0, keepdims=True) / n_queries
        # (1,1) VMEM out: single 4-byte writeback, negligible; SMEM scalar out would need a
        # vector->scalar extract whose lowering is not verified on all generations.
        out_ref[...] = nll_fwd + rev_sc[...]


def _vmem_budget_bytes():
    """~70% of physical VMEM: ~45 MiB on v7x (64 MiB/TC), ~90 MiB on v5e/v6e (128 MiB)."""
    try:
        cap = int(pltpu.get_tpu_info().vmem_capacity_bytes)
    except Exception:
        cap = 128 * 1024 * 1024
    return int(cap * 0.7)


def decomposed_contrastive_loss(q, d_pos, d_neg, w_mix, b_mix,
                                temperature=TEMPERATURE, tile_b=None, neg_buffers=2):
    """q: [B,E], d_pos: [B,F,E], d_neg: [B,F,N,E] (docs may be bf16) -> scalar loss."""
    B, E = q.shape
    Bp, F, Ep = d_pos.shape
    Bn, Fn, N, En = d_neg.shape
    assert Bp == B and Ep == E and Fn == F and En == E and Bn == B
    M = Bn * N
    doc_dtype = d_neg.dtype

    # mixture-of-fields gate (the pluggable layer): tiny [B, F] op, stays in XLA.
    gate = jax.nn.softmax(
        jnp.dot(q.astype(jnp.float32), w_mix.astype(jnp.float32))
        + b_mix.astype(jnp.float32)[None, :], axis=-1)                       # [B, F]

    # Per-field gate-scaled queries, field-major (tiny): qg_t[f] = gate[:, f, None] * q.
    qg_t = jnp.transpose(gate[:, :, None] * q.astype(jnp.float32)[:, None, :],
                         (1, 0, 2)).astype(doc_dtype)                        # [F, B, E]
    dpos_t = jnp.transpose(d_pos, (1, 0, 2))                                 # [F, B, E] (tiny)

    # Negatives stay in their natural [B, F, N, E] layout: no transpose, no pad, no extra
    # HBM pass.  Tile the batch axis so each streamed slab is multi-MiB within the VMEM budget.
    itemsize = np.dtype(doc_dtype).itemsize
    budget = _vmem_budget_bytes()
    if tile_b is None:
        per_tb = N * E * itemsize * max(2, neg_buffers) + B * N * 4         # streamed bufs + f32 acc
        resident = 2 * (B * E + Bp * Ep) * itemsize * 2 + B * Bp * 4 + (1 << 20)
        tile_b = max(1, (int(budget * 0.9) - resident) // per_tb)
    tile_b = int(max(1, min(tile_b, Bn)))
    num_m_tiles = pl.cdiv(Bn, tile_b)
    tile_cols = tile_b * N

    dneg_index_map = lambda mt, f: (mt, f, 0, 0)
    if neg_buffers != 2:
        # Optional deeper pipelining if xprof shows exposed DMA between steps (fits budget by
        # construction since tile_b was sized with neg_buffers).  Default stays at 2.
        dneg_spec = pl.BlockSpec((tile_b, 1, N, E), dneg_index_map,
                                 pipeline_mode=pl.Buffered(neg_buffers))
    else:
        dneg_spec = pl.BlockSpec((tile_b, 1, N, E), dneg_index_map)

    kernel = functools.partial(_loss_kernel, inv_t=1.0 / temperature,
                               valid_m=M, n_queries=float(B))
    out = pl.pallas_call(
        kernel,
        out_shape=jax.ShapeDtypeStruct((1, 1), jnp.float32),
        grid_spec=pltpu.PrefetchScalarGridSpec(
            num_scalar_prefetch=0,
            grid=(num_m_tiles, F),                               # F innermost: field reduction
            in_specs=[
                pl.BlockSpec((1, B, E), lambda mt, f: (f, 0, 0)),   # gate-scaled q, field f
                pl.BlockSpec((1, B, E), lambda mt, f: (f, 0, 0)),   # d_pos, field f (tiny)
                dneg_spec,                                          # d_neg slab (streamed)
            ],
            out_specs=pl.BlockSpec((1, 1), lambda mt, f: (0, 0)),
            scratch_shapes=[
                pltpu.VMEM((B, B), jnp.float32),            # positive-score accumulator
                pltpu.VMEM((B, tile_cols), jnp.float32),    # per-tile field accumulator
                pltpu.VMEM((B, 1), jnp.float32),            # running row max   (forward LSE)
                pltpu.VMEM((B, 1), jnp.float32),            # running row sum-exp
                pltpu.VMEM((B, 1), jnp.float32),            # diag(scores_pos)
                pltpu.VMEM((1, 1), jnp.float32),            # reverse-direction nll
            ],
        ),
        compiler_params=pltpu.CompilerParams(
            # Both axes carry scratch state (online LSE / field accumulation) -> "arbitrary".
            dimension_semantics=("arbitrary", "arbitrary"),
            vmem_limit_bytes=budget,
        ),
    )(qg_t, dpos_t, d_neg)
    return out[0, 0]


def reference_loss(q, d_pos, d_neg, w_mix, b_mix, temperature=TEMPERATURE):
    """Pure-JAX mirror of the PyTorch forward (single device)."""
    B, E = q.shape
    F = d_pos.shape[1]
    N = d_neg.shape[2]
    gate = jax.nn.softmax(q @ w_mix + b_mix, axis=-1)                   # [B, F]

    sp_comp = jnp.einsum('be,jfe->bjf', q, d_pos) / temperature         # [B, B, F]
    dneg_flat = jnp.transpose(d_neg, (0, 2, 1, 3)).reshape(B * N, F, E)
    sn_comp = jnp.einsum('be,mfe->bmf', q, dneg_flat) / temperature     # [B, B*N, F]

    scores_pos = jnp.einsum('bjf,bf->bj', sp_comp, gate)
    scores_neg = jnp.einsum('bmf,bf->bm', sn_comp, gate)
    all_scores = jnp.concatenate([scores_pos, scores_neg], axis=1)
    lp = jax.nn.log_softmax(all_scores, axis=1)
    nll = -jnp.mean(jnp.diag(lp[:, :B]))

    # reverse direction, exactly as compute_doc_query_scores does it
    rev_comp = jnp.einsum('jfe,xe->jfx', d_pos, q) / temperature        # [B, F, B]
    rev_comp = jnp.transpose(rev_comp, (2, 0, 1))                       # [B, B, F]
    rev_mixed = jnp.einsum('xjf,xf->xj', rev_comp, gate)
    rev_scores = rev_mixed.T
    lp_rev = jax.nn.log_softmax(rev_scores, axis=1)
    nll += -jnp.mean(jnp.diag(lp_rev[:, :B]))
    return nll


if __name__ == "__main__":
    # M = B*N = 320 negatives; N = 40 (sublane-aligned for the in-kernel slab collapse).
    B, F, N, E = 8, 4, 40, 32

    key = jax.random.PRNGKey(0)
    kq, kp, kn, kw, kb = jax.random.split(key, 5)
    q = jax.random.normal(kq, (B, E), jnp.float32) / np.sqrt(E)
    d_pos = jax.random.normal(kp, (B, F, E), jnp.float32) / np.sqrt(E)
    d_neg = jax.random.normal(kn, (B, F, N, E), jnp.float32) / np.sqrt(E)
    # mixture_of_fields_layer parameters (deterministic init)
    w_mix = jax.random.normal(kw, (E, F), jnp.float32) * 0.1
    b_mix = jax.random.normal(kb, (F,), jnp.float32) * 0.1

    ref = jax.block_until_ready(reference_loss(q, d_pos, d_neg, w_mix, b_mix))

    # 1) forced small batch tile: 3 m-tiles, ragged last tile exercises the clip+mask path.
    loss_tiled = jax.block_until_ready(
        decomposed_contrastive_loss(q, d_pos, d_neg, w_mix, b_mix, tile_b=3))
    np.testing.assert_allclose(np.asarray(loss_tiled), np.asarray(ref), rtol=1e-3, atol=1e-3)

    # 2) auto tile sizing from the VMEM budget (single tile at this size).
    loss_auto = jax.block_until_ready(
        decomposed_contrastive_loss(q, d_pos, d_neg, w_mix, b_mix))
    np.testing.assert_allclose(np.asarray(loss_auto), np.asarray(ref), rtol=1e-3, atol=1e-3)

    print("KERNEL_OK")
</pallas_src>

<mosaic_0001>
module attributes {stable_mosaic.version = 11 : i64} {
  func.func @_loss_kernel(%arg0: i32, %arg1: i32, %arg2: memref<1x8x32xf32, #tpu.memory_space<vmem>>, %arg3: memref<1x8x32xf32, #tpu.memory_space<vmem>>, %arg4: memref<3x1x40x32xf32, #tpu.memory_space<vmem>>, %arg5: memref<1x1xf32, #tpu.memory_space<vmem>>, %arg6: memref<8x8xf32, #tpu.memory_space<vmem>>, %arg7: memref<8x120xf32, #tpu.memory_space<vmem>>, %arg8: memref<8x1xf32, #tpu.memory_space<vmem>>, %arg9: memref<8x1xf32, #tpu.memory_space<vmem>>, %arg10: memref<8x1xf32, #tpu.memory_space<vmem>>, %arg11: memref<1x1xf32, #tpu.memory_space<vmem>>) attributes {dimension_semantics = [#tpu.dimension_semantics<arbitrary>, #tpu.dimension_semantics<arbitrary>], iteration_bounds = array<i64: 3, 4>, scalar_prefetch = 0 : i64, scratch_operands = 6 : i64, tpu.core_type = #tpu.core_type<tc>, window_params = [{transform_indices = @transform_0, window_bounds = array<i64: 1, 8, 32>}, {transform_indices = @transform_1, window_bounds = array<i64: 1, 8, 32>}, {transform_indices = @transform_2, window_bounds = array<i64: 3, 1, 40, 32>}, {pipeline_mode = #tpu.pipeline_mode<synchronous>, transform_indices = @transform_3, window_bounds = array<i64: 1, 1>}]} {
    %c0_i32 = arith.constant 0 : i32
    %0 = arith.cmpi eq, %arg0, %c0_i32 : i32
    %c0_i32_0 = arith.constant 0 : i32
    %1 = arith.cmpi eq, %arg1, %c0_i32_0 : i32
    %2 = arith.andi %0, %1 : i1
    %3 = arith.extui %2 : i1 to i32
    %c0_i32_1 = arith.constant 0 : i32
    %4 = arith.cmpi ne, %3, %c0_i32_1 : i32
    scf.if %4 {
      %cst_22 = arith.constant 0xFF800000 : f32
      %32 = vector.broadcast %cst_22 : f32 to vector<8x1xf32>
      %c0_23 = arith.constant 0 : index
      %c0_24 = arith.constant 0 : index
      %33 = vector.load %arg8[%c0_23, %c0_24] : memref<8x1xf32, #tpu.memory_space<vmem>>, vector<8x1xf32>
      tpu.vector_store %arg8[%c0_23, %c0_24], %32 {strides = array<i32>} : memref<8x1xf32, #tpu.memory_space<vmem>>, vector<8x1xf32>,
      %cst_25 = arith.constant 0.000000e+00 : f32
      %34 = vector.broadcast %cst_25 : f32 to vector<8x1xf32>
      %c0_26 = arith.constant 0 : index
      %c0_27 = arith.constant 0 : index
      %35 = vector.load %arg9[%c0_26, %c0_27] : memref<8x1xf32, #tpu.memory_space<vmem>>, vector<8x1xf32>
      tpu.vector_store %arg9[%c0_26, %c0_27], %34 {strides = array<i32>} : memref<8x1xf32, #tpu.memory_space<vmem>>, vector<8x1xf32>,
      %cst_28 = arith.constant 0.000000e+00 : f32
      %36 = vector.broadcast %cst_28 : f32 to vector<8x8xf32>
      %c0_29 = arith.constant 0 : index
      %c0_30 = arith.constant 0 : index
      %37 = vector.load %arg6[%c0_29, %c0_30] : memref<8x8xf32, #tpu.memory_space<vmem>>, vector<8x8xf32>
      tpu.vector_store %arg6[%c0_29, %c0_30], %36 {strides = array<i32>} : memref<8x8xf32, #tpu.memory_space<vmem>>, vector<8x8xf32>,
      %cst_31 = arith.constant 0.000000e+00 : f32
      %38 = vector.broadcast %cst_31 : f32 to vector<8x1xf32>
      %c0_32 = arith.constant 0 : index
      %c0_33 = arith.constant 0 : index
      %39 = vector.load %arg10[%c0_32, %c0_33] : memref<8x1xf32, #tpu.memory_space<vmem>>, vector<8x1xf32>
      tpu.vector_store %arg10[%c0_32, %c0_33], %38 {strides = array<i32>} : memref<8x1xf32, #tpu.memory_space<vmem>>, vector<8x1xf32>,
    } else {
    }
    %c0 = arith.constant 0 : index
    %c0_2 = arith.constant 0 : index
    %c0_3 = arith.constant 0 : index
    %5 = vector.load %arg2[%c0, %c0_2, %c0_3] : memref<1x8x32xf32, #tpu.memory_space<vmem>>, vector<1x8x32xf32>
    %6 = vector.shape_cast %5 : vector<1x8x32xf32> to vector<8x32xf32>
    %c0_i32_4 = arith.constant 0 : i32
    %7 = arith.cmpi eq, %arg0, %c0_i32_4 : i32
    %8 = arith.extui %7 : i1 to i32
    %c0_i32_5 = arith.constant 0 : i32
    %9 = arith.cmpi ne, %8, %c0_i32_5 : i32
    scf.if %9 {
      %c0_22 = arith.constant 0 : index
      %c0_23 = arith.constant 0 : index
      %c0_24 = arith.constant 0 : index
      %32 = vector.load %arg3[%c0_22, %c0_23, %c0_24] : memref<1x8x32xf32, #tpu.memory_space<vmem>>, vector<1x8x32xf32>
      %33 = vector.shape_cast %32 : vector<1x8x32xf32> to vector<8x32xf32>
      %c0_25 = arith.constant 0 : index
      %c0_26 = arith.constant 0 : index
      %34 = vector.load %arg6[%c0_25, %c0_26] : memref<8x8xf32, #tpu.memory_space<vmem>>, vector<8x8xf32>
      %cst_27 = arith.constant dense<0.000000e+00> : vector<8x8xf32>
      %35 = tpu.matmul %6, %33, %cst_27 {dimension_numbers = #tpu.dot_dimension_numbers<[1], [1], [0], [0], [0, 0, 1, 0], [], []>} : vector<8x32xf32>, vector<8x32xf32>, vector<8x8xf32> -> vector<8x8xf32>
      %36 = arith.addf %34, %35 : vector<8x8xf32>
      %c0_28 = arith.constant 0 : index
      %c0_29 = arith.constant 0 : index
      %37 = vector.load %arg6[%c0_28, %c0_29] : memref<8x8xf32, #tpu.memory_space<vmem>>, vector<8x8xf32>
      tpu.vector_store %arg6[%c0_28, %c0_29], %36 {strides = array<i32>} : memref<8x8xf32, #tpu.memory_space<vmem>>, vector<8x8xf32>,
      %c0_30 = arith.constant 0 : index
      %c0_31 = arith.constant 0 : index
      %38 = vector.load %arg10[%c0_30, %c0_31] : memref<8x1xf32, #tpu.memory_space<vmem>>, vector<8x1xf32>
      %39 = arith.mulf %6, %33 : vector<8x32xf32>
      %cst_32 = arith.constant dense<0.000000e+00> : vector<8xf32>
      %40 = vector.multi_reduction <add>, %39, %cst_32 [1] : vector<8x32xf32> to vector<8xf32>
      %41 = vector.shape_cast %40 : vector<8xf32> to vector<8x1xf32>
      %42 = arith.addf %38, %41 : vector<8x1xf32>
      %c0_33 = arith.constant 0 : index
      %c0_34 = arith.constant 0 : index
      %43 = vector.load %arg10[%c0_33, %c0_34] : memref<8x1xf32, #tpu.memory_space<vmem>>, vector<8x1xf32>
      tpu.vector_store %arg10[%c0_33, %c0_34], %42 {strides = array<i32>} : memref<8x1xf32, #tpu.memory_space<vmem>>, vector<8x1xf32>,
    } else {
    }
    %c0_i32_6 = arith.constant 0 : i32
    %10 = arith.cmpi eq, %arg1, %c0_i32_6 : i32
    %11 = arith.extui %10 : i1 to i32
    %c0_i32_7 = arith.constant 0 : i32
    %12 = arith.cmpi ne, %11, %c0_i32_7 : i32
    scf.if %12 {
      %cst_22 = arith.constant 0.000000e+00 : f32
      %32 = vector.broadcast %cst_22 : f32 to vector<8x120xf32>
      %c0_23 = arith.constant 0 : index
      %c0_24 = arith.constant 0 : index
      %33 = vector.load %arg7[%c0_23, %c0_24] : memref<8x120xf32, #tpu.memory_space<vmem>>, vector<8x120xf32>
      tpu.vector_store %arg7[%c0_23, %c0_24], %32 {strides = array<i32>} : memref<8x120xf32, #tpu.memory_space<vmem>>, vector<8x120xf32>,
    } else {
    }
    %c0_8 = arith.constant 0 : index
    %c0_9 = arith.constant 0 : index
    %c0_10 = arith.constant 0 : index
    %c0_11 = arith.constant 0 : index
    %13 = vector.load %arg4[%c0_8, %c0_9, %c0_10, %c0_11] : memref<3x1x40x32xf32, #tpu.memory_space<vmem>>, vector<3x1x40x32xf32>
    %14 = vector.shape_cast %13 : vector<3x1x40x32xf32> to vector<120x32xf32>
    %c0_12 = arith.constant 0 : index
    %c0_13 = arith.constant 0 : index
    %15 = vector.load %arg7[%c0_12, %c0_13] : memref<8x120xf32, #tpu.memory_space<vmem>>, vector<8x120xf32>
    %cst = arith.constant dense<0.000000e+00> : vector<8x120xf32>
    %16 = tpu.matmul %6, %14, %cst {dimension_numbers = #tpu.dot_dimension_numbers<[1], [1], [0], [0], [0, 0, 1, 0], [], []>} : vector<8x32xf32>, vector<120x32xf32>, vector<8x120xf32> -> vector<8x120xf32>
    %17 = arith.addf %15, %16 : vector<8x120xf32>
    %c0_14 = arith.constant 0 : index
    %c0_15 = arith.constant 0 : index
    %18 = vector.load %arg7[%c0_14, %c0_15] : memref<8x120xf32, #tpu.memory_space<vmem>>, vector<8x120xf32>
    tpu.vector_store %arg7[%c0_14, %c0_15], %17 {strides = array<i32>} : memref<8x120xf32, #tpu.memory_space<vmem>>, vector<8x120xf32>,
    %c3_i32 = arith.constant 3 : i32
    %19 = arith.cmpi eq, %arg1, %c3_i32 : i32
    %20 = arith.extui %19 : i1 to i32
    %c0_i32_16 = arith.constant 0 : i32
    %21 = arith.cmpi ne, %20, %c0_i32_16 : i32
    scf.if %21 {
      %c0_22 = arith.constant 0 : index
      %c0_23 = arith.constant 0 : index
      %32 = vector.load %arg7[%c0_22, %c0_23] : memref<8x120xf32, #tpu.memory_space<vmem>>, vector<8x120xf32>
      %cst_24 = arith.constant 1.000000e+02 : f32
      %33 = vector.broadcast %cst_24 : f32 to vector<8x120xf32>
      %34 = arith.mulf %32, %33 : vector<8x120xf32>
      %c120_i32 = arith.constant 120 : i32
      %35 = arith.muli %arg0, %c120_i32 : i32
      %36 = tpu.iota {dimensions = array<i32: 1>} : vector<1x120xi32>
      %37 = vector.broadcast %35 : i32 to vector<1x120xi32>
      %38 = arith.addi %37, %36 : vector<1x120xi32>
      %c320_i32 = arith.constant 320 : i32
      %39 = vector.broadcast %c320_i32 : i32 to vector<1x120xi32>
      %40 = arith.cmpi slt, %38, %39 : vector<1x120xi32>
      %cst_25 = arith.constant -1.000000e+30 : f32
      %41 = vector.shape_cast %40 : vector<1x120xi1> to vector<1x120xi1>
      %42 = vector.broadcast %41 : vector<1x120xi1> to vector<8x120xi1>
      %43 = vector.broadcast %cst_25 : f32 to vector<8x120xf32>
      %44 = arith.select %42, %34, %43 : vector<8x120xi1>, vector<8x120xf32>
      %cst_26 = arith.constant dense<0xFF800000> : vector<8xf32>
      %45 = vector.multi_reduction <maximumf>, %44, %cst_26 [1] : vector<8x120xf32> to vector<8xf32>
      %46 = vector.shape_cast %45 : vector<8xf32> to vector<8x1xf32>
      %c0_27 = arith.constant 0 : index
      %c0_28 = arith.constant 0 : index
      %47 = vector.load %arg8[%c0_27, %c0_28] : memref<8x1xf32, #tpu.memory_space<vmem>>, vector<8x1xf32>
      %48 = arith.maximumf %47, %46 : vector<8x1xf32>
      %c0_29 = arith.constant 0 : index
      %c0_30 = arith.constant 0 : index
      %49 = vector.load %arg9[%c0_29, %c0_30] : memref<8x1xf32, #tpu.memory_space<vmem>>, vector<8x1xf32>
      %c0_31 = arith.constant 0 : index
      %c0_32 = arith.constant 0 : index
      %50 = vector.load %arg8[%c0_31, %c0_32] : memref<8x1xf32, #tpu.memory_space<vmem>>, vector<8x1xf32>
      %51 = arith.subf %50, %48 : vector<8x1xf32>
      %52 = math.exp %51 : vector<8x1xf32>
      %53 = arith.mulf %49, %52 : vector<8x1xf32>
      %54 = vector.broadcast %48 : vector<8x1xf32> to vector<8x120xf32>
      %55 = arith.subf %44, %54 : vector<8x120xf32>
      %56 = math.exp %55 : vector<8x120xf32>
      %cst_33 = arith.constant dense<0.000000e+00> : vector<8xf32>
      %57 = vector.multi_reduction <add>, %56, %cst_33 [1] : vector<8x120xf32> to vector<8xf32>
      %58 = vector.shape_cast %57 : vector<8xf32> to vector<8x1xf32>
      %59 = arith.addf %53, %58 : vector<8x1xf32>
      %c0_34 = arith.constant 0 : index
      %c0_35 = arith.constant 0 : index
      %60 = vector.load %arg9[%c0_34, %c0_35] : memref<8x1xf32, #tpu.memory_space<vmem>>, vector<8x1xf32>
      tpu.vector_store %arg9[%c0_34, %c0_35], %59 {strides = array<i32>} : memref<8x1xf32, #tpu.memory_space<vmem>>, vector<8x1xf32>,
      %c0_36 = arith.constant 0 : index
      %c0_37 = arith.constant 0 : index
      %61 = vector.load %arg8[%c0_36, %c0_37] : memref<8x1xf32, #tpu.memory_space<vmem>>, vector<8x1xf32>
      tpu.vector_store %arg8[%c0_36, %c0_37], %48 {strides = array<i32>} : memref<8x1xf32, #tpu.memory_space<vmem>>, vector<8x1xf32>,
    } else {
    }
    %c0_i32_17 = arith.constant 0 : i32
    %22 = arith.cmpi eq, %arg0, %c0_i32_17 : i32
    %c3_i32_18 = arith.constant 3 : i32
    %23 = arith.cmpi eq, %arg1, %c3_i32_18 : i32
    %24 = arith.andi %22, %23 : i1
    %25 = arith.extui %24 : i1 to i32
    %c0_i32_19 = arith.constant 0 : i32
    %26 = arith.cmpi ne, %25, %c0_i32_19 : i32
    scf.if %26 {
      %c0_22 = arith.constant 0 : index
      %c0_23 = arith.constant 0 : index
      %32 = vector.load %arg6[%c0_22, %c0_23] : memref<8x8xf32, #tpu.memory_space<vmem>>, vector<8x8xf32>
      %cst_24 = arith.constant 1.000000e+02 : f32
      %33 = vector.broadcast %cst_24 : f32 to vector<8x8xf32>
      %34 = arith.mulf %32, %33 : vector<8x8xf32>
      %c0_25 = arith.constant 0 : index
      %c0_26 = arith.constant 0 : index
      %35 = vector.load %arg10[%c0_25, %c0_26] : memref<8x1xf32, #tpu.memory_space<vmem>>, vector<8x1xf32>
      %cst_27 = arith.constant 1.000000e+02 : f32
      %36 = vector.broadcast %cst_27 : f32 to vector<8x1xf32>
      %37 = arith.mulf %35, %36 : vector<8x1xf32>
      %c0_28 = arith.constant 0 : index
      %c0_29 = arith.constant 0 : index
      %38 = vector.load %arg10[%c0_28, %c0_29] : memref<8x1xf32, #tpu.memory_space<vmem>>, vector<8x1xf32>
      tpu.vector_store %arg10[%c0_28, %c0_29], %37 {strides = array<i32>} : memref<8x1xf32, #tpu.memory_space<vmem>>, vector<8x1xf32>,
      %cst_30 = arith.constant dense<0xFF800000> : vector<8xf32>
      %39 = vector.multi_reduction <maximumf>, %34, %cst_30 [1] : vector<8x8xf32> to vector<8xf32>
      %40 = vector.shape_cast %39 : vector<8xf32> to vector<8x1xf32>
      %c0_31 = arith.constant 0 : index
      %c0_32 = arith.constant 0 : index
      %41 = vector.load %arg8[%c0_31, %c0_32] : memref<8x1xf32, #tpu.memory_space<vmem>>, vector<8x1xf32>
      %42 = arith.maximumf %41, %40 : vector<8x1xf32>
      %c0_33 = arith.constant 0 : index
      %c0_34 = arith.constant 0 : index
      %43 = vector.load %arg9[%c0_33, %c0_34] : memref<8x1xf32, #tpu.memory_space<vmem>>, vector<8x1xf32>
      %c0_35 = arith.constant 0 : index
      %c0_36 = arith.constant 0 : index
      %44 = vector.load %arg8[%c0_35, %c0_36] : memref<8x1xf32, #tpu.memory_space<vmem>>, vector<8x1xf32>
      %45 = arith.subf %44, %42 : vector<8x1xf32>
      %46 = math.exp %45 : vector<8x1xf32>
      %47 = arith.mulf %43, %46 : vector<8x1xf32>
      %48 = vector.broadcast %42 : vector<8x1xf32> to vector<8x8xf32>
      %49 = arith.subf %34, %48 : vector<8x8xf32>
      %50 = math.exp %49 : vector<8x8xf32>
      %cst_37 = arith.constant dense<0.000000e+00> : vector<8xf32>
      %51 = vector.multi_reduction <add>, %50, %cst_37 [1] : vector<8x8xf32> to vector<8xf32>
      %52 = vector.shape_cast %51 : vector<8xf32> to vector<8x1xf32>
      %53 = arith.addf %47, %52 : vector<8x1xf32>
      %c0_38 = arith.constant 0 : index
      %c0_39 = arith.constant 0 : index
      %54 = vector.load %arg9[%c0_38, %c0_39] : memref<8x1xf32, #tpu.memory_space<vmem>>, vector<8x1xf32>
      tpu.vector_store %arg9[%c0_38, %c0_39], %53 {strides = array<i32>} : memref<8x1xf32, #tpu.memory_space<vmem>>, vector<8x1xf32>,
      %c0_40 = arith.constant 0 : index
      %c0_41 = arith.constant 0 : index
      %55 = vector.load %arg8[%c0_40, %c0_41] : memref<8x1xf32, #tpu.memory_space<vmem>>, vector<8x1xf32>
      tpu.vector_store %arg8[%c0_40, %c0_41], %42 {strides = array<i32>} : memref<8x1xf32, #tpu.memory_space<vmem>>, vector<8x1xf32>,
      %cst_42 = arith.constant dense<0xFF800000> : vector<8xf32>
      %56 = vector.multi_reduction <maximumf>, %34, %cst_42 [0] : vector<8x8xf32> to vector<8xf32>
      %57 = vector.shape_cast %56 : vector<8xf32> to vector<1x8xf32>
      %58 = vector.broadcast %57 : vector<1x8xf32> to vector<8x8xf32>
      %59 = arith.subf %34, %58 : vector<8x8xf32>
      %60 = math.exp %59 : vector<8x8xf32>
      %cst_43 = arith.constant dense<0.000000e+00> : vector<8xf32>
      %61 = vector.multi_reduction <add>, %60, %cst_43 [0] : vector<8x8xf32> to vector<8xf32>
      %62 = vector.shape_cast %61 : vector<8xf32> to vector<1x8xf32>
      %63 = math.log %62 : vector<1x8xf32>
      %64 = arith.addf %57, %63 : vector<1x8xf32>
      %cst_44 = arith.constant dense<0.000000e+00> : vector<1xf32>
      %65 = vector.multi_reduction <add>, %37, %cst_44 [0] : vector<8x1xf32> to vector<1xf32>
      %66 = vector.shape_cast %65 : vector<1xf32> to vector<1x1xf32>
      %cst_45 = arith.constant dense<0.000000e+00> : vector<1xf32>
      %67 = vector.multi_reduction <add>, %64, %cst_45 [1] : vector<1x8xf32> to vector<1xf32>
      %68 = vector.shape_cast %67 : vector<1xf32> to vector<1x1xf32>
      %69 = arith.subf %66, %68 : vector<1x1xf32>
      %cst_46 = arith.constant 0.000000e+00 : f32
      %70 = vector.broadcast %cst_46 : f32 to vector<1x1xf32>
      %71 = arith.subf %70, %69 : vector<1x1xf32>
      %cst_47 = arith.constant 8.000000e+00 : f32
      %72 = vector.broadcast %cst_47 : f32 to vector<1x1xf32>
      %73 = arith.divf %71, %72 : vector<1x1xf32>
      %c0_48 = arith.constant 0 : index
      %c0_49 = arith.constant 0 : index
      %74 = vector.load %arg11[%c0_48, %c0_49] : memref<1x1xf32, #tpu.memory_space<vmem>>, vector<1x1xf32>
      tpu.vector_store %arg11[%c0_48, %c0_49], %73 {strides = array<i32>} : memref<1x1xf32, #tpu.memory_space<vmem>>, vector<1x1xf32>,
    } else {
    }
    %c2_i32 = arith.constant 2 : i32
    %27 = arith.cmpi eq, %arg0, %c2_i32 : i32
    %c3_i32_20 = arith.constant 3 : i32
    %28 = arith.cmpi eq, %arg1, %c3_i32_20 : i32
    %29 = arith.andi %27, %28 : i1
    %30 = arith.extui %29 : i1 to i32
    %c0_i32_21 = arith.constant 0 : i32
    %31 = arith.cmpi ne, %30, %c0_i32_21 : i32
    scf.if %31 {
      %c0_22 = arith.constant 0 : index
      %c0_23 = arith.constant 0 : index
      %32 = vector.load %arg8[%c0_22, %c0_23] : memref<8x1xf32, #tpu.memory_space<vmem>>, vector<8x1xf32>
      %c0_24 = arith.constant 0 : index
      %c0_25 = arith.constant 0 : index
      %33 = vector.load %arg9[%c0_24, %c0_25] : memref<8x1xf32, #tpu.memory_space<vmem>>, vector<8x1xf32>
      %34 = math.log %33 : vector<8x1xf32>
      %35 = arith.addf %32, %34 : vector<8x1xf32>
      %c0_26 = arith.constant 0 : index
      %c0_27 = arith.constant 0 : index
      %36 = vector.load %arg10[%c0_26, %c0_27] : memref<8x1xf32, #tpu.memory_space<vmem>>, vector<8x1xf32>
      %37 = arith.subf %36, %35 : vector<8x1xf32>
      %cst_28 = arith.constant dense<0.000000e+00> : vector<1xf32>
      %38 = vector.multi_reduction <add>, %37, %cst_28 [0] : vector<8x1xf32> to vector<1xf32>
      %39 = vector.shape_cast %38 : vector<1xf32> to vector<1x1xf32>
      %cst_29 = arith.constant 0.000000e+00 : f32
      %40 = vector.broadcast %cst_29 : f32 to vector<1x1xf32>
      %41 = arith.subf %40, %39 : vector<1x1xf32>
      %cst_30 = arith.constant 8.000000e+00 : f32
      %42 = vector.broadcast %cst_30 : f32 to vector<1x1xf32>
      %43 = arith.divf %41, %42 : vector<1x1xf32>
      %c0_31 = arith.constant 0 : index
      %c0_32 = arith.constant 0 : index
      %44 = vector.load %arg11[%c0_31, %c0_32] : memref<1x1xf32, #tpu.memory_space<vmem>>, vector<1x1xf32>
      %45 = arith.addf %43, %44 : vector<1x1xf32>
      %c0_33 = arith.constant 0 : index
      %c0_34 = arith.constant 0 : index
      %46 = vector.load %arg5[%c0_33, %c0_34] : memref<1x1xf32, #tpu.memory_space<vmem>>, vector<1x1xf32>
      tpu.vector_store %arg5[%c0_33, %c0_34], %45 {strides = array<i32>} : memref<1x1xf32, #tpu.memory_space<vmem>>, vector<1x1xf32>,
    } else {
    }
    return
  }
  func.func @transform_0(%arg0: i32, %arg1: i32) -> (i32, i32, i32) {
    %c0_i32 = arith.constant 0 : i32
    %c0_i32_0 = arith.constant 0 : i32
    %c0_i32_1 = arith.constant 0 : i32
    return %arg1, %c0_i32, %c0_i32_0 : i32, i32, i32
  }
  func.func @transform_1(%arg0: i32, %arg1: i32) -> (i32, i32, i32) {
    %c0_i32 = arith.constant 0 : i32
    %c0_i32_0 = arith.constant 0 : i32
    %c0_i32_1 = arith.constant 0 : i32
    return %arg1, %c0_i32, %c0_i32_0 : i32, i32, i32
  }
  func.func @transform_2(%arg0: i32, %arg1: i32) -> (i32, i32, i32, i32) {
    %c0_i32 = arith.constant 0 : i32
    %c0_i32_0 = arith.constant 0 : i32
    %c0_i32_1 = arith.constant 0 : i32
    return %arg0, %arg1, %c0_i32, %c0_i32_0 : i32, i32, i32, i32
  }
  func.func @transform_3(%arg0: i32, %arg1: i32) -> (i32, i32) {
    %c0_i32 = arith.constant 0 : i32
    %c0_i32_0 = arith.constant 0 : i32
    %c0_i32_1 = arith.constant 0 : i32
    return %c0_i32, %c0_i32_0 : i32, i32
  }
}

</mosaic_0001>

<llo_original>
// kernel: tpu_custom_call.1
$region0: #{tpu_custom_call.1}
  #allocation0 [shape = 'u32[]', space=smem, size = 0x4, offset = 0x4, fixed_abs, tag = 'smem constant byte address 0x4 - core index']
  #allocation1 [shape = 'u32[144,128]{1,0:T(1,128)}', space=vmem, size = 0x12000, scoped, tag = 'internal scratch']
  #allocation2 [shape = 'f32[8,8]{1,0:T(8,128)}', space=vmem, size = 0x1000, scoped, tag = 'scratch operand']
  #allocation3 [shape = 'f32[8,120]{1,0:T(8,128)}', space=vmem, size = 0x1000, scoped, tag = 'scratch operand']
  #allocation4 [shape = 'f32[8,1]{1,0:T(8,128)}', space=vmem, size = 0x1000, scoped, tag = 'scratch operand']
  #allocation5 [shape = 'f32[8,1]{1,0:T(8,128)}', space=vmem, size = 0x1000, scoped, tag = 'scratch operand']
  #allocation6 [shape = 'f32[8,1]{1,0:T(8,128)}', space=vmem, size = 0x1000, scoped, tag = 'scratch operand']
  #allocation7 [shape = 'f32[1,1]{1,0:T(1,128)}', space=vmem, size = 0x200, scoped, tag = 'scratch operand']
  %s0 = inlined_call_operand.vmem [shape: f32[4,8,32], index: 0, kind: input, shape index: {}]
  %s1 = inlined_call_operand.vmem [shape: f32[4,8,32], index: 1, kind: input, shape index: {}]
  %s2 = inlined_call_operand.vmem [shape: f32[8,4,40,32], index: 2, kind: input, shape index: {}]
  %s3 = inlined_call_operand.hbm [shape: f32[1,1], index: 3, kind: output, shape index: {}]
  %s4 = sld [smem:[#allocation0]]
  $region121: #{tpu_custom_call.1} parent=0
    _
  %s6 = ssub.s32 1, %s4
  %s7 = scalar_select 0, %s6, %s4
  $region1: #{tpu_custom_call.1} parent=0
    #allocation8 [shape = 'u8[122880]{0}', space=vmem, size = 0x1e000, scoped, tag = 'input window, operand 2']
    #allocation9 [shape = 'u8[512]{0}', space=vmem, size = 0x400, scoped, tag = 'output window, operand 0, single buffered']
    #allocation10 [shape = 's32[2]{0}', space=sflag, size = 0x8, scoped, tag = 'scoped memory for tpu_custom_call.1']
    %8 = vsyncpa [#allocation10], 0
    loop: start=0, step=1, limit=14
    $region2: #{tpu_custom_call.1} parent=1 // loop_pre_header
      _
    $region3: #{tpu_custom_call.1} parent=1 // loop_header
      %s10 = sphi 0, %s14
      %p11 = scmp.ge.s32.totalorder %s10, 14
      %s17 = sphi 0, %s29
      %s18 = sphi 0, %s25
      %s19 = sphi 0, %s17
      %s20 = sphi 0, %s18
      %s21 = sphi 0, %s19
      %s22 = sphi 0, %s20
      %s32 = sphi 0, %s34
      %s35 = sphi 0, %s32
      %s36 = sphi 0, %s35
      %s52 = sphi 0, %s36
      %s58 = sphi 0, %s60
      %s61 = sphi 0, %s58
      %s62 = sphi 0, %s61
      %s78 = sphi 0, %s62
      %s86 = sphi 0, %s88
      %s89 = sphi 0, %s86
      %s90 = sphi 0, %s89
      %s106 = sphi 0, %s90
      %s110 = sphi 0, %s110
      %s112 = sphi 0, %s110
      %s113 = sphi 0, %s112
      %s127 = sphi 0, %s113
    $region4: #{tpu_custom_call.1} parent=1 // loop_header_branch
      %13 = sbr.rel (%p11) target = $region8
    $region5: #{tpu_custom_call.1} parent=1 // loop_body
      %s15 = ssub.s32 %s10, 1
      %s16 = ssub.s32 %s10, 2
      %s23 = sadd.s32 1, %s18
      %p24 = scmp.ge.s32.totalorder %s23, 4
      %s25 = scalar_select %p24, 0, %s23
      %s26 = sadd.s32 1, %s17
      %s27 = scalar_select %p24, %s26, %s17
      %p28 = scmp.ge.s32.totalorder %s27, 3
      %s29 = scalar_select %p28, 0, %s27
      %s30 = ssub.s32 %s18, %s25
      %p31 = scmp.eq.s32.totalorder %s30, 0
      %s33 = sadd.s32 %s32, 1
      %s34 = scalar_select %p31, %s32, %s33
      %p37 = pneg %p31
      %p38 = scmp.eq.s32.totalorder %s10, 11
      %p39 = por %p37, %p38
      %p40 = scmp.ne.s32.totalorder %s32, %s35
      %p41 = scmp.eq.s32.totalorder %s10, 0
      %p42 = por %p40, %p41
      %p43 = scmp.ne.s32.totalorder %s32, %s35
      %p44 = scmp.eq.s32.totalorder %s15, 11
      %p45 = por %p43, %p44
      %p46 = scmp.ne.s32.totalorder %s35, %s36
      %p47 = scmp.eq.s32.totalorder %s15, 0
      %p48 = por %p46, %p47
      %p49 = scmp.ne.s32.totalorder %s35, %s36
      %p50 = scmp.eq.s32.totalorder %s16, 11
      %p51 = por %p49, %p50
      %p53 = scmp.ne.s32.totalorder %s36, %s52
      %p54 = scmp.eq.s32.totalorder %s16, 0
      %p55 = por %p53, %p54
      %s56 = ssub.s32 %s18, %s25
      %p57 = scmp.eq.s32.totalorder %s56, 0
      %s59 = sadd.s32 %s58, 1
      %s60 = scalar_select %p57, %s58, %s59
      %p63 = pneg %p57
      %p64 = scmp.eq.s32.totalorder %s10, 11
      %p65 = por %p63, %p64
      %p66 = scmp.ne.s32.totalorder %s58, %s61
      %p67 = scmp.eq.s32.totalorder %s10, 0
      %p68 = por %p66, %p67
      %p69 = scmp.ne.s32.totalorder %s58, %s61
      %p70 = scmp.eq.s32.totalorder %s15, 11
      %p71 = por %p69, %p70
      %p72 = scmp.ne.s32.totalorder %s61, %s62
      %p73 = scmp.eq.s32.totalorder %s15, 0
      %p74 = por %p72, %p73
      %p75 = scmp.ne.s32.totalorder %s61, %s62
      %p76 = scmp.eq.s32.totalorder %s16, 11
      %p77 = por %p75, %p76
      %p79 = scmp.ne.s32.totalorder %s62, %s78
      %p80 = scmp.eq.s32.totalorder %s16, 0
      %p81 = por %p79, %p80
      %s82 = ssub.s32 %s17, %s29
      %s83 = ssub.s32 %s18, %s25
      %s84 = sor.u32 %s82, %s83
      %p85 = scmp.eq.s32.totalorder %s84, 0
      %s87 = sadd.s32 %s86, 1
      %s88 = scalar_select %p85, %s86, %s87
      %p91 = pneg %p85
      %p92 = scmp.eq.s32.totalorder %s10, 11
      %p93 = por %p91, %p92
      %p94 = scmp.ne.s32.totalorder %s86, %s89
      %p95 = scmp.eq.s32.totalorder %s10, 0
      %p96 = por %p94, %p95
      %p97 = scmp.ne.s32.totalorder %s86, %s89
      %p98 = scmp.eq.s32.totalorder %s15, 11
      %p99 = por %p97, %p98
      %p100 = scmp.ne.s32.totalorder %s89, %s90
      %p101 = scmp.eq.s32.totalorder %s15, 0
      %p102 = por %p100, %p101
      %p103 = scmp.ne.s32.totalorder %s89, %s90
      %p104 = scmp.eq.s32.totalorder %s16, 11
      %p105 = por %p103, %p104
      %p107 = scmp.ne.s32.totalorder %s90, %s106
      %p108 = scmp.eq.s32.totalorder %s16, 0
      %p109 = por %p107, %p108
      %s111 = sadd.s32 %s110, 1
      %p114 = scmp.eq.s32.totalorder %s10, 11
      %p115 = scmp.ne.s32.totalorder %s110, %s112
      %p116 = scmp.eq.s32.totalorder %s10, 0
      %p117 = por %p115, %p116
      %p118 = scmp.ne.s32.totalorder %s110, %s112
      %p119 = scmp.eq.s32.totalorder %s15, 11
      %p120 = por %p118, %p119
      %p121 = scmp.ne.s32.totalorder %s112, %s113
      %p122 = scmp.eq.s32.totalorder %s15, 0
      %p123 = por %p121, %p122
      %p124 = scmp.ne.s32.totalorder %s112, %s113
      %p125 = scmp.eq.s32.totalorder %s16, 11
      %p126 = por %p124, %p125
      %p128 = scmp.ne.s32.totalorder %s113, %s127
      %p129 = scmp.eq.s32.totalorder %s16, 0
      %p130 = por %p128, %p129
      %p131 = scmp.le.s32.totalorder 1, %s10
      %p132 = scmp.lt.s32.totalorder %s10, 13
      %p133 = pnand %p131, %p132
      %p134 = pneg %p133
      // Predicated region
      $region9: #{tpu_custom_call.1} parent=5 // pred_check
        _
      $region10: #{tpu_custom_call.1} parent=5 // pred_check_branch
        %136 = sbr.rel (%p133) target = $region12
      $region11: #{tpu_custom_call.1} parent=5 // pred_region
        %s137 = ssub.s32 %s10, 1
      $region12: #{tpu_custom_call.1} parent=5 // pred_fallthru
        _
      %p138 = scmp.lt.s32.totalorder %s10, 12
      // Predicated region
      $region13: #{tpu_custom_call.1} parent=5 // pred_check
        %p139 = pneg %p138
      $region14: #{tpu_custom_call.1} parent=5 // pred_check_branch
        %141 = sbr.rel (%p139) target = $region16
      $region15: #{tpu_custom_call.1} parent=5 // pred_region
        // Predicated region
        $region17: #{tpu_custom_call.1} parent=15 // pred_check
          %p142 = pneg %p42
        $region18: #{tpu_custom_call.1} parent=15 // pred_check_branch
          %144 = sbr.rel (%p142) target = $region20
        $region19: #{tpu_custom_call.1} parent=15 // pred_region
          %p145 = scmp.lt.s32.totalorder %s18, 3
          %s146 = scalar_select %p145, %s18, 3
          %s147 = smul.addr %s146, 8
          %s148 = scalar_lea.vmem %s0, %s147
        $region20: #{tpu_custom_call.1} parent=15 // pred_fallthru
          _
        // Predicated region
        $region21: #{tpu_custom_call.1} parent=15 // pred_check
          %p149 = pneg %p68
        $region22: #{tpu_custom_call.1} parent=15 // pred_check_branch
          %151 = sbr.rel (%p149) target = $region24
        $region23: #{tpu_custom_call.1} parent=15 // pred_region
          %p152 = scmp.lt.s32.totalorder %s18, 3
          %s153 = scalar_select %p152, %s18, 3
          %s154 = smul.addr %s153, 8
          %s155 = scalar_lea.vmem %s1, %s154
        $region24: #{tpu_custom_call.1} parent=15 // pred_fallthru
          _
        // Predicated region
        $region25: #{tpu_custom_call.1} parent=15 // pred_check
          %p156 = pneg %p96
        $region26: #{tpu_custom_call.1} parent=15 // pred_check_branch
          %158 = sbr.rel (%p156) target = $region28
        $region27: #{tpu_custom_call.1} parent=15 // pred_region
          %s159 = sand.u32 %s86, 1
          %s160 = sand.u32 %s86, 1
          %s161 = smul.addr %s160, 120
          %s162 = scalar_lea.vmem [#allocation8], %s161
          %s163 = smul.u32 3, %s17
          %s164 = ssub.s32 8, %s163
          %p165 = scmp.lt.s32.totalorder %s164, 3
          %s166 = scalar_select %p165, %s164, 3
          %s167 = smul.u32 128, %s166
          %s168 = smul.u32 %s167, 5
          %p169 = scmp.ne.s32.totalorder 0, %s168
          %s170 = smul.addr %s18, 5
          %s171 = smul.addr %s163, 20
          %s172 = sadd.s32 %s170, %s171
          %s173 = smul.addr %s172, 8
          %s174 = scalar_lea.vmem %s2, %s173
          // Predicated region
          $region29: #{tpu_custom_call.1} parent=27 // pred_check
            %p175 = pneg %p169
          $region30: #{tpu_custom_call.1} parent=27 // pred_check_branch
            %177 = sbr.rel (%p175) target = $region32
          $region31: #{tpu_custom_call.1} parent=27 // pred_region
            // Predicated region
            $region33: #{tpu_custom_call.1} parent=31 // pred_check
              _
            $region34: #{tpu_custom_call.1} parent=31 // pred_check_branch
              %179 = sbr.rel (0) target = $region36
            $region35: #{tpu_custom_call.1} parent=31 // pred_region
              // Predicated region
              $region55: #{tpu_custom_call.1} parent=35 // pred_check
                _
              $region56: #{tpu_custom_call.1} parent=35 // pred_check_branch
                %266 = sbr.rel (0) target = $region58
              $region57: #{tpu_custom_call.1} parent=35 // pred_region
                %s267 = sdiv.u32.pop %s166, 3
                %s268 = srem.u32.pop %s166, 3
                // While loop
                $region59: #{tpu_custom_call.1} parent=57 // loop_pre_header
                  _
                $region60: #{tpu_custom_call.1} parent=57 // loop_header
                  %s270 = sphi 0, %s272
                  %p271 = scmp.ge.s32.totalorder %s270, %s267
                  %s275 = sphi 0, %s310
                  %s276 = sphi %s174, %s313
                  %s277 = sphi %s162, %s314
                $region61: #{tpu_custom_call.1} parent=57 // loop_header_branch
                  %274 = sbr.rel (%p271) target = $region65
                $region62: #{tpu_custom_call.1} parent=57 // loop_body
                  %v278 = vld [vmem:[%s276] sm:$0xff]
                  %279 = vst [vmem:[%s277] sm:$0xff] %v278
                  %v280 = vld [vmem:[%s276 + $0xa0] sm:$0xff]
                  %281 = vst [vmem:[%s277 + $0x28] sm:$0xff] %v280
                  %v282 = vld [vmem:[%s276 + $0x140] sm:$0xff]
                  %283 = vst [vmem:[%s277 + $0x50] sm:$0xff] %v282
                  %v284 = vld [vmem:[%s276 + $0x8] sm:$0xff]
                  %285 = vst [vmem:[%s277 + $0x8] sm:$0xff] %v284
                  %v286 = vld [vmem:[%s276 + $0xa8] sm:$0xff]
                  %287 = vst [vmem:[%s277 + $0x30] sm:$0xff] %v286
                  %v288 = vld [vmem:[%s276 + $0x148] sm:$0xff]
                  %289 = vst [vmem:[%s277 + $0x58] sm:$0xff] %v288
                  %v290 = vld [vmem:[%s276 + $0x10] sm:$0xff]
                  %291 = vst [vmem:[%s277 + $0x10] sm:$0xff] %v290
                  %v292 = vld [vmem:[%s276 + $0xb0] sm:$0xff]
                  %293 = vst [vmem:[%s277 + $0x38] sm:$0xff] %v292
                  %v294 = vld [vmem:[%s276 + $0x150] sm:$0xff]
                  %295 = vst [vmem:[%s277 + $0x60] sm:$0xff] %v294
                  %v296 = vld [vmem:[%s276 + $0x18] sm:$0xff]
                  %297 = vst [vmem:[%s277 + $0x18] sm:$0xff] %v296
                  %v298 = vld [vmem:[%s276 + $0xb8] sm:$0xff]
                  %299 = vst [vmem:[%s277 + $0x40] sm:$0xff] %v298
                  %v300 = vld [vmem:[%s276 + $0x158] sm:$0xff]
                  %301 = vst [vmem:[%s277 + $0x68] sm:$0xff] %v300
                  %v302 = vld [vmem:[%s276 + $0x20] sm:$0xff]
                  %303 = vst [vmem:[%s277 + $0x20] sm:$0xff] %v302
                  %v304 = vld [vmem:[%s276 + $0xc0] sm:$0xff]
                  %305 = vst [vmem:[%s277 + $0x48] sm:$0xff] %v304
                  %v306 = vld [vmem:[%s276 + $0x160] sm:$0xff]
                  %307 = vst [vmem:[%s277 + $0x70] sm:$0xff] %v306
                  %s308 = sadd.s32 1, %s275
                  %p309 = scmp.ge.s32.totalorder %s308, %s267
                  %s310 = scalar_select %p309, 0, %s308
                  %s311 = smul.u32 %s310, 480
                  %s312 = smul.u32 %s310, 120
                  %s313 = scalar_lea.vmem %s174, %s311
                  %s314 = scalar_lea.vmem %s162, %s312 [#allocation8]
                $region63: #{tpu_custom_call.1} parent=57 // loop_footer
                  %s272 = sadd.s32 %s270, 1
                $region64: #{tpu_custom_call.1} parent=57 // loop_footer_branch
                  %269 = sbr.rel target = $region60
                $region65: #{tpu_custom_call.1} parent=57 // loop_exit
                  _
                %s315 = sdiv.u32.pop %s166, 3
                %s316 = srem.u32.pop %s166, 3
                %s317 = smul.u32 %s315, 3
                %s318 = smul.u32 160, %s317
                %s319 = scalar_lea.vmem %s174, %s318
                %s320 = smul.u32 40, %s317
                %s321 = scalar_lea.vmem %s162, %s320 [#allocation8]
                // While loop
                $region66: #{tpu_custom_call.1} parent=57 // loop_pre_header
                  _
                $region67: #{tpu_custom_call.1} parent=57 // loop_header
                  %s323 = sphi 0, %s325
                  %p324 = scmp.ge.s32.totalorder %s323, %s316
                  %s328 = sphi 0, %s343
                  %s329 = sphi %s319, %s346
                  %s330 = sphi %s321, %s347
                $region68: #{tpu_custom_call.1} parent=57 // loop_header_branch
                  %327 = sbr.rel (%p324) target = $region72
                $region69: #{tpu_custom_call.1} parent=57 // loop_body
                  %v331 = vld [vmem:[%s329] sm:$0xff]
                  %332 = vst [vmem:[%s330] sm:$0xff] %v331
                  %v333 = vld [vmem:[%s329 + $0x8] sm:$0xff]
                  %334 = vst [vmem:[%s330 + $0x8] sm:$0xff] %v333
                  %v335 = vld [vmem:[%s329 + $0x10] sm:$0xff]
                  %336 = vst [vmem:[%s330 + $0x10] sm:$0xff] %v335
                  %v337 = vld [vmem:[%s329 + $0x18] sm:$0xff]
                  %338 = vst [vmem:[%s330 + $0x18] sm:$0xff] %v337
                  %v339 = vld [vmem:[%s329 + $0x20] sm:$0xff]
                  %340 = vst [vmem:[%s330 + $0x20] sm:$0xff] %v339
                  %s341 = sadd.s32 1, %s328
                  %p342 = scmp.ge.s32.totalorder %s341, %s316
                  %s343 = scalar_select %p342, 0, %s341
                  %s344 = smul.u32 %s343, 160
                  %s345 = smul.u32 %s343, 40
                  %s346 = scalar_lea.vmem %s319, %s344
                  %s347 = scalar_lea.vmem %s321, %s345 [#allocation8]
                $region70: #{tpu_custom_call.1} parent=57 // loop_footer
                  %s325 = sadd.s32 %s323, 1
                $region71: #{tpu_custom_call.1} parent=57 // loop_footer_branch
                  %322 = sbr.rel target = $region67
                $region72: #{tpu_custom_call.1} parent=57 // loop_exit
                  _
              $region58: #{tpu_custom_call.1} parent=35 // pred_fallthru
                _
              // Predicated region
              $region73: #{tpu_custom_call.1} parent=35 // pred_check
                _
              $region74: #{tpu_custom_call.1} parent=35 // pred_check_branch
                %349 = sbr.rel target = $region76
              $region75: #{tpu_custom_call.1} parent=35 // pred_region
                _
              $region76: #{tpu_custom_call.1} parent=35 // pred_fallthru
                _
            $region36: #{tpu_custom_call.1} parent=31 // pred_fallthru
              _
            // Predicated region
            $region37: #{tpu_custom_call.1} parent=31 // pred_check
              _
            $region38: #{tpu_custom_call.1} parent=31 // pred_check_branch
              %181 = sbr.rel target = $region40
            $region39: #{tpu_custom_call.1} parent=31 // pred_region
              %s183 = ssub.s32 256, 1
              %s184 = sdiv.u32.pop %s166, 3
              %s185 = srem.u32.pop %s166, 3
              // While loop
              $region41: #{tpu_custom_call.1} parent=39 // loop_pre_header
                _
              $region42: #{tpu_custom_call.1} parent=39 // loop_header
                %s187 = sphi 0, %s189
                %p188 = scmp.ge.s32.totalorder %s187, %s184
                %s192 = sphi 0, %s227
                %s193 = sphi %s174, %s230
                %s194 = sphi %s162, %s231
              $region43: #{tpu_custom_call.1} parent=39 // loop_header_branch
                %191 = sbr.rel (%p188) target = $region47
              $region44: #{tpu_custom_call.1} parent=39 // loop_body
                %v195 = vld [vmem:[%s193] sm:%s183]
                %196 = vst [vmem:[%s194] sm:%s183] %v195
                %v197 = vld [vmem:[%s193 + $0xa0] sm:%s183]
                %198 = vst [vmem:[%s194 + $0x28] sm:%s183] %v197
                %v199 = vld [vmem:[%s193 + $0x140] sm:%s183]
                %200 = vst [vmem:[%s194 + $0x50] sm:%s183] %v199
                %v201 = vld [vmem:[%s193 + $0x8] sm:%s183]
                %202 = vst [vmem:[%s194 + $0x8] sm:%s183] %v201
                %v203 = vld [vmem:[%s193 + $0xa8] sm:%s183]
                %204 = vst [vmem:[%s194 + $0x30] sm:%s183] %v203
                %v205 = vld [vmem:[%s193 + $0x148] sm:%s183]
                %206 = vst [vmem:[%s194 + $0x58] sm:%s183] %v205
                %v207 = vld [vmem:[%s193 + $0x10] sm:%s183]
                %208 = vst [vmem:[%s194 + $0x10] sm:%s183] %v207
                %v209 = vld [vmem:[%s193 + $0xb0] sm:%s183]
                %210 = vst [vmem:[%s194 + $0x38] sm:%s183] %v209
                %v211 = vld [vmem:[%s193 + $0x150] sm:%s183]
                %212 = vst [vmem:[%s194 + $0x60] sm:%s183] %v211
                %v213 = vld [vmem:[%s193 + $0x18] sm:%s183]
                %214 = vst [vmem:[%s194 + $0x18] sm:%s183] %v213
                %v215 = vld [vmem:[%s193 + $0xb8] sm:%s183]
                %216 = vst [vmem:[%s194 + $0x40] sm:%s183] %v215
                %v217 = vld [vmem:[%s193 + $0x158] sm:%s183]
                %218 = vst [vmem:[%s194 + $0x68] sm:%s183] %v217
                %v219 = vld [vmem:[%s193 + $0x20] sm:%s183]
                %220 = vst [vmem:[%s194 + $0x20] sm:%s183] %v219
                %v221 = vld [vmem:[%s193 + $0xc0] sm:%s183]
                %222 = vst [vmem:[%s194 + $0x48] sm:%s183] %v221
                %v223 = vld [vmem:[%s193 + $0x160] sm:%s183]
                %224 = vst [vmem:[%s194 + $0x70] sm:%s183] %v223
                %s225 = sadd.s32 1, %s192
                %p226 = scmp.ge.s32.totalorder %s225, %s184
                %s227 = scalar_select %p226, 0, %s225
                %s228 = smul.u32 %s227, 480
                %s229 = smul.u32 %s227, 120
                %s230 = scalar_lea.vmem %s174, %s228
                %s231 = scalar_lea.vmem %s162, %s229 [#allocation8]
              $region45: #{tpu_custom_call.1} parent=39 // loop_footer
                %s189 = sadd.s32 %s187, 1
              $region46: #{tpu_custom_call.1} parent=39 // loop_footer_branch
                %186 = sbr.rel target = $region42
              $region47: #{tpu_custom_call.1} parent=39 // loop_exit
                _
              %s232 = sdiv.u32.pop %s166, 3
              %s233 = srem.u32.pop %s166, 3
              %s234 = smul.u32 %s232, 3
              %s235 = smul.u32 160, %s234
              %s236 = scalar_lea.vmem %s174, %s235
              %s237 = smul.u32 40, %s234
              %s238 = scalar_lea.vmem %s162, %s237 [#allocation8]
              // While loop
              $region48: #{tpu_custom_call.1} parent=39 // loop_pre_header
                _
              $region49: #{tpu_custom_call.1} parent=39 // loop_header
                %s240 = sphi 0, %s242
                %p241 = scmp.ge.s32.totalorder %s240, %s233
                %s245 = sphi 0, %s260
                %s246 = sphi %s236, %s263
                %s247 = sphi %s238, %s264
              $region50: #{tpu_custom_call.1} parent=39 // loop_header_branch
                %244 = sbr.rel (%p241) target = $region54
              $region51: #{tpu_custom_call.1} parent=39 // loop_body
                %v248 = vld [vmem:[%s246] sm:%s183]
                %249 = vst [vmem:[%s247] sm:%s183] %v248
                %v250 = vld [vmem:[%s246 + $0x8] sm:%s183]
                %251 = vst [vmem:[%s247 + $0x8] sm:%s183] %v250
                %v252 = vld [vmem:[%s246 + $0x10] sm:%s183]
                %253 = vst [vmem:[%s247 + $0x10] sm:%s183] %v252
                %v254 = vld [vmem:[%s246 + $0x18] sm:%s183]
                %255 = vst [vmem:[%s247 + $0x18] sm:%s183] %v254
                %v256 = vld [vmem:[%s246 + $0x20] sm:%s183]
                %257 = vst [vmem:[%s247 + $0x20] sm:%s183] %v256
                %s258 = sadd.s32 1, %s245
                %p259 = scmp.ge.s32.totalorder %s258, %s233
                %s260 = scalar_select %p259, 0, %s258
                %s261 = smul.u32 %s260, 160
                %s262 = smul.u32 %s260, 40
                %s263 = scalar_lea.vmem %s236, %s261
                %s264 = scalar_lea.vmem %s238, %s262 [#allocation8]
              $region52: #{tpu_custom_call.1} parent=39 // loop_footer
                %s242 = sadd.s32 %s240, 1
              $region53: #{tpu_custom_call.1} parent=39 // loop_footer_branch
                %239 = sbr.rel target = $region49
              $region54: #{tpu_custom_call.1} parent=39 // loop_exit
                _
            $region40: #{tpu_custom_call.1} parent=31 // pred_fallthru
              _
          $region32: #{tpu_custom_call.1} parent=27 // pred_fallthru
            _
          %350 = vnop
        $region28: #{tpu_custom_call.1} parent=15 // pred_fallthru
          _
      $region16: #{tpu_custom_call.1} parent=5 // pred_fallthru
        _
      %p351 = scmp.le.s32.totalorder 1, %s10
      %p352 = scmp.lt.s32.totalorder %s10, 13
      %p353 = pnand %p351, %p352
      %p354 = pneg %p353
      // Predicated region
      $region77: #{tpu_custom_call.1} parent=5 // pred_check
        _
      $region78: #{tpu_custom_call.1} parent=5 // pred_check_branch
        %356 = sbr.rel (%p353) target = $region80
      $region79: #{tpu_custom_call.1} parent=5 // pred_region
        %s357 = ssub.s32 %s10, 1
        %s358 = sand.u32 %s89, 1
        %s359 = sand.u32 %s89, 1
        %s360 = smul.addr %s359, 120
        %s361 = scalar_lea.vmem [#allocation8], %s360
        // Predicated region
        $region81: #{tpu_custom_call.1} parent=79 // pred_check
          %p362 = pneg %p102
        $region82: #{tpu_custom_call.1} parent=79 // pred_check_branch
          %364 = sbr.rel (%p362) target = $region84
        $region83: #{tpu_custom_call.1} parent=79 // pred_region
          _
        $region84: #{tpu_custom_call.1} parent=79 // pred_fallthru
          _
        %p365 = scmp.lt.s32.totalorder %s20, 3
        %s366 = scalar_select %p365, %s20, 3
        %s367 = smul.addr %s366, 8
        %s368 = scalar_lea.vmem %s0, %s367
        %p369 = pneg %p48
        %p370 = pneg %p45
        %p371 = scmp.lt.s32.totalorder %s20, 3
        %s372 = scalar_select %p371, %s20, 3
        %s373 = smul.addr %s372, 8
        %s374 = scalar_lea.vmem %s1, %s373
        %p375 = pneg %p74
        %p376 = pneg %p71
        %s377 = sand.u32 %s89, 1
        %s378 = sand.u32 %s89, 1
        %s379 = smul.addr %s378, 120
        %s380 = scalar_lea.vmem [#allocation8], %s379
        %p381 = pneg %p102
        %p382 = pneg %p99
        %p383 = pneg %p123
        %p384 = pneg %p120
        %p385 = scmp.lt.s32.totalorder %s20, 3
        %s386 = scalar_select %p385, %s20, 3
        %s387 = smul.addr %s386, 8
        %s388 = scalar_lea.vmem %s0, %s387
        %p389 = scmp.lt.s32.totalorder %s20, 3
        %s390 = scalar_select %p389, %s20, 3
        %s391 = smul.addr %s390, 8
        %s392 = scalar_lea.vmem %s1, %s391
        %s393 = smul.u32 3, %s19
        %s394 = ssub.s32 8, %s393
        %p395 = scmp.lt.s32.totalorder %s394, 3
        %s396 = scalar_select %p395, %s394, 3
        %s397 = smul.u32 128, %s396
        %s398 = smul.u32 %s397, 5
        %p399 = scmp.eq.s32.totalorder %s19, 0
        %p400 = scmp.eq.s32.totalorder %s20, 0
        %p401 = pnand %p399, %p400
        %p402 = pneg %p401
        // Predicated region
        $region85: #{tpu_custom_call.1} parent=79 // pred_check
          _
        $region86: #{tpu_custom_call.1} parent=79 // pred_check_branch
          %404 = sbr.rel (%p401) target = $region88
        $region87: #{tpu_custom_call.1} parent=79 // pred_region
          %vm405 = vcmask 7168
          %406 = vst.msk [vmem:[#allocation4] sm:$0xff] %vm405, -inf
          %407 = vst.msk [vmem:[#allocation5] sm:$0xff] %vm405, 0.0
          %vm408 = vcmask 64512
          %409 = vst.msk [vmem:[#allocation2] sm:$0xff] %vm408, 0.0
          %410 = vst.msk [vmem:[#allocation6] sm:$0xff] %vm405, 0.0
        $region88: #{tpu_custom_call.1} parent=79 // pred_fallthru
          _
        %v411 = vld [vmem:[%s388] sm:$0xff]
        // Predicated region
        $region89: #{tpu_custom_call.1} parent=79 // pred_check
          %p412 = pneg %p399
        $region90: #{tpu_custom_call.1} parent=79 // pred_check_branch
          %414 = sbr.rel (%p412) target = $region92
        $region91: #{tpu_custom_call.1} parent=79 // pred_region
          %v415 = vld [vmem:[%s392] sm:$0xff]
          %v416 = vld [vmem:[#allocation2] sm:$0xff]
          %vm417 = vcmask 261120
          %v419 = vsel %vm417, %v411, 0
          %v422 = vsel %vm417, %v415, 0
          %424 = vmatprep.subr.mxu0 0.0
          %425 = vmatpush1.xpose.msra.mxu0 0.0
          %426 = vmatprep.subr.mxu0 0.0
          %427 = vmatpush1.xpose.msra.mxu0 0.0
          %428 = vmatprep.subr.mxu0 0.0
          %429 = vmatpush1.xpose.msra.mxu0 0.0
          %430 = vmatprep.subr.mxu0 0.0
          %431 = vmatpush1.xpose.msra.mxu0 0.0
          %432 = vmatprep.subr.mxu0 0.0
          %433 = vmatpush1.xpose.msra.mxu0 0.0
          %434 = vmatprep.subr.mxu0 0.0
          %435 = vmatpush1.xpose.msra.mxu0 0.0
          %436 = vmatprep.subr.mxu0 0.0
          %437 = vmatpush1.xpose.msra.mxu0 0.0
          %438 = vmatprep.subr.mxu0 0.0
          %439 = vmatpush1.xpose.msra.mxu0 0.0
          %440 = vmatprep.subr.mxu0 0.0
          %441 = vmatpush1.xpose.msra.mxu0 0.0
          %442 = vmatprep.subr.mxu0 0.0
          %443 = vmatpush1.xpose.msra.mxu0 0.0
          %444 = vmatprep.subr.mxu0 0.0
          %445 = vmatpush1.xpose.msra.mxu0 0.0
          %446 = vmatprep.subr.mxu0 0.0
          %447 = vmatpush1.xpose.msra.mxu0 0.0
          %448 = vmatprep.subr.mxu0 0.0
          %449 = vmatpush1.xpose.msra.mxu0 0.0
          %450 = vmatprep.subr.mxu0 0.0
          %451 = vmatpush1.xpose.msra.mxu0 0.0
          %452 = vmatprep.subr.mxu0 0.0
          %453 = vmatpush1.xpose.msra.mxu0 0.0
          %454 = vmatprep.subr.mxu0 0.0
          %455 = vmatpush1.xpose.msra.mxu0 %v422
          %456 = vmatprep.subr.mxu0 0.0
          %457 = vmatpush2.xpose.msra.mxu0 0.0
          %458 = vmatprep.subr.mxu0 0.0
          %459 = vmatpush2.xpose.msra.mxu0 0.0
          %460 = vmatprep.subr.mxu0 0.0
          %461 = vmatpush2.xpose.msra.mxu0 0.0
          %462 = vmatprep.subr.mxu0 0.0
          %463 = vmatpush2.xpose.msra.mxu0 0.0
          %464 = vmatprep.subr.mxu0 0.0
          %465 = vmatpush2.xpose.msra.mxu0 0.0
          %466 = vmatprep.subr.mxu0 0.0
          %467 = vmatpush2.xpose.msra.mxu0 0.0
          %468 = vmatprep.subr.mxu0 0.0
          %469 = vmatpush2.xpose.msra.mxu0 0.0
          %470 = vmatprep.subr.mxu0 0.0
          %471 = vmatpush2.xpose.msra.mxu0 0.0
          %472 = vmatprep.subr.mxu0 0.0
          %473 = vmatpush2.xpose.msra.mxu0 0.0
          %474 = vmatprep.subr.mxu0 0.0
          %475 = vmatpush2.xpose.msra.mxu0 0.0
          %476 = vmatprep.subr.mxu0 0.0
          %477 = vmatpush2.xpose.msra.mxu0 0.0
          %478 = vmatprep.subr.mxu0 0.0
          %479 = vmatpush2.xpose.msra.mxu0 0.0
          %480 = vmatprep.subr.mxu0 0.0
          %481 = vmatpush2.xpose.msra.mxu0 0.0
          %482 = vmatprep.subr.mxu0 0.0
          %483 = vmatpush2.xpose.msra.mxu0 0.0
          %484 = vmatprep.subr.mxu0 0.0
          %485 = vmatpush2.xpose.msra.mxu0 0.0
          %486 = vmatprep.subr.mxu0 0.0
          %487 = vmatpush2.xpose.msra.mxu0 0.0
          %488 = vmatprep.mubr.f32.mxu0 0.0
          %489 = vmatmul.mubr.f32.gmra.mxu0 %v419
          %v490 = vpop.f32.mrf.mxu0
          %v491 = vadd.f32 0.0, %v490
          %v492 = vpop.f32.mrf.mxu0
          %493 = vdwg.mxu0
          %v494 = vadd.f32 %v416, %v491
          %vm495 = vcmask 64512
          %496 = vst.msk [vmem:[#allocation2] sm:$0xff] %vm495, %v494
          %v497 = vld [vmem:[#allocation6] sm:$0xff]
          %v498 = vmul.f32 %v411, %v415
          %v499 = vsel %vm417, %v498, 0.0
          %500 = vadd.xlane.f32.xlu0 %v499
          %v501 = vpop.xlane.xlu0 %500
          %v502 = vadd.f32 %v497, %v501
          %vm503 = vcmask 7168
          %504 = vst.msk [vmem:[#allocation6] sm:$0xff] %vm503, %v502
        $region92: #{tpu_custom_call.1} parent=79 // pred_fallthru
          _
        // Predicated region
        $region93: #{tpu_custom_call.1} parent=79 // pred_check
          %p505 = pneg %p400
        $region94: #{tpu_custom_call.1} parent=79 // pred_check_branch
          %507 = sbr.rel (%p505) target = $region96
        $region95: #{tpu_custom_call.1} parent=79 // pred_region
          %vm508 = vcmask 982016
          %509 = vst.msk [vmem:[#allocation3] sm:$0xff] %vm508, 0.0
        $region96: #{tpu_custom_call.1} parent=79 // pred_fallthru
          _
        %v510 = vld [vmem:[%s361] sm:$0xff]
        %v511 = vld [vmem:[%s361 + $0x8] sm:$0xff]
        %v512 = vld [vmem:[%s361 + $0x10] sm:$0xff]
        %v513 = vld [vmem:[%s361 + $0x18] sm:$0xff]
        %v514 = vld [vmem:[%s361 + $0x20] sm:$0xff]
        %v515 = vld [vmem:[%s361 + $0x28] sm:$0xff]
        %v516 = vld [vmem:[%s361 + $0x30] sm:$0xff]
        %v517 = vld [vmem:[%s361 + $0x38] sm:$0xff]
        %v518 = vld [vmem:[%s361 + $0x40] sm:$0xff]
        %v519 = vld [vmem:[%s361 + $0x48] sm:$0xff]
        %v520 = vld [vmem:[%s361 + $0x50] sm:$0xff]
        %v521 = vld [vmem:[%s361 + $0x58] sm:$0xff]
        %v522 = vld [vmem:[%s361 + $0x60] sm:$0xff]
        %v523 = vld [vmem:[%s361 + $0x68] sm:$0xff]
        %v524 = vld [vmem:[%s361 + $0x70] sm:$0xff]
        %v525 = vld [vmem:[#allocation3] sm:$0xff]
        %vm526 = vcmask 261120
        %v528 = vsel %vm526, %v411, 0
        %v531 = vsel %vm526, %v510, 0
        %v534 = vsel %vm526, %v511, 0
        %v537 = vsel %vm526, %v512, 0
        %v540 = vsel %vm526, %v513, 0
        %v543 = vsel %vm526, %v514, 0
        %v546 = vsel %vm526, %v515, 0
        %v549 = vsel %vm526, %v516, 0
        %v552 = vsel %vm526, %v517, 0
        %v555 = vsel %vm526, %v518, 0
        %v558 = vsel %vm526, %v519, 0
        %v561 = vsel %vm526, %v520, 0
        %v564 = vsel %vm526, %v521, 0
        %v567 = vsel %vm526, %v522, 0
        %v570 = vsel %vm526, %v523, 0
        %v573 = vsel %vm526, %v524, 0
        %575 = vmatprep.subr.mxu0 0.0
        %576 = vmatpush1.xpose.msra.mxu0 0.0
        %577 = vmatprep.subr.mxu0 0.0
        %578 = vmatpush1.xpose.msra.mxu0 %v573
        %579 = vmatprep.subr.mxu0 0.0
        %580 = vmatpush1.xpose.msra.mxu0 %v570
        %581 = vmatprep.subr.mxu0 0.0
        %582 = vmatpush1.xpose.msra.mxu0 %v567
        %583 = vmatprep.subr.mxu0 0.0
        %584 = vmatpush1.xpose.msra.mxu0 %v564
        %585 = vmatprep.subr.mxu0 0.0
        %586 = vmatpush1.xpose.msra.mxu0 %v561
        %587 = vmatprep.subr.mxu0 0.0
        %588 = vmatpush1.xpose.msra.mxu0 %v558
        %589 = vmatprep.subr.mxu0 0.0
        %590 = vmatpush1.xpose.msra.mxu0 %v555
        %591 = vmatprep.subr.mxu0 0.0
        %592 = vmatpush1.xpose.msra.mxu0 %v552
        %593 = vmatprep.subr.mxu0 0.0
        %594 = vmatpush1.xpose.msra.mxu0 %v549
        %595 = vmatprep.subr.mxu0 0.0
        %596 = vmatpush1.xpose.msra.mxu0 %v546
        %597 = vmatprep.subr.mxu0 0.0
        %598 = vmatpush1.xpose.msra.mxu0 %v543
        %599 = vmatprep.subr.mxu0 0.0
        %600 = vmatpush1.xpose.msra.mxu0 %v540
        %601 = vmatprep.subr.mxu0 0.0
        %602 = vmatpush1.xpose.msra.mxu0 %v537
        %603 = vmatprep.subr.mxu0 0.0
        %604 = vmatpush1.xpose.msra.mxu0 %v534
        %605 = vmatprep.subr.mxu0 0.0
        %606 = vmatpush1.xpose.msra.mxu0 %v531
        %607 = vmatprep.subr.mxu0 0.0
        %608 = vmatpush2.xpose.msra.mxu0 0.0
        %609 = vmatprep.subr.mxu0 0.0
        %610 = vmatpush2.xpose.msra.mxu0 0.0
        %611 = vmatprep.subr.mxu0 0.0
        %612 = vmatpush2.xpose.msra.mxu0 0.0
        %613 = vmatprep.subr.mxu0 0.0
        %614 = vmatpush2.xpose.msra.mxu0 0.0
        %615 = vmatprep.subr.mxu0 0.0
        %616 = vmatpush2.xpose.msra.mxu0 0.0
        %617 = vmatprep.subr.mxu0 0.0
        %618 = vmatpush2.xpose.msra.mxu0 0.0
        %619 = vmatprep.subr.mxu0 0.0
        %620 = vmatpush2.xpose.msra.mxu0 0.0
        %621 = vmatprep.subr.mxu0 0.0
        %622 = vmatpush2.xpose.msra.mxu0 0.0
        %623 = vmatprep.subr.mxu0 0.0
        %624 = vmatpush2.xpose.msra.mxu0 0.0
        %625 = vmatprep.subr.mxu0 0.0
        %626 = vmatpush2.xpose.msra.mxu0 0.0
        %627 = vmatprep.subr.mxu0 0.0
        %628 = vmatpush2.xpose.msra.mxu0 0.0
        %629 = vmatprep.subr.mxu0 0.0
        %630 = vmatpush2.xpose.msra.mxu0 0.0
        %631 = vmatprep.subr.mxu0 0.0
        %632 = vmatpush2.xpose.msra.mxu0 0.0
        %633 = vmatprep.subr.mxu0 0.0
        %634 = vmatpush2.xpose.msra.mxu0 0.0
        %635 = vmatprep.subr.mxu0 0.0
        %636 = vmatpush2.xpose.msra.mxu0 0.0
        %637 = vmatprep.subr.mxu0 0.0
        %638 = vmatpush2.xpose.msra.mxu0 0.0
        %639 = vmatprep.mubr.f32.mxu0 0.0
        %640 = vmatmul.mubr.f32.gmra.mxu0 %v528
        %v641 = vpop.f32.mrf.mxu0
        %v642 = vadd.f32 0.0, %v641
        %v643 = vpop.f32.mrf.mxu0
        %644 = vdwg.mxu0
        %v645 = vadd.f32 %v525, %v642
        %vm646 = vcmask 982016
        %647 = vst.msk [vmem:[#allocation3] sm:$0xff] %vm646, %v645
        %p648 = scmp.eq.s32.totalorder %s20, 3
        // Predicated region
        $region97: #{tpu_custom_call.1} parent=79 // pred_check
          %p649 = pneg %p648
        $region98: #{tpu_custom_call.1} parent=79 // pred_check_branch
          %651 = sbr.rel (%p649) target = $region100
        $region99: #{tpu_custom_call.1} parent=79 // pred_region
          %v652 = vld [vmem:[#allocation3] sm:$0xff]
          %v653 = vmul.f32 %v652, 100.0
          %s654 = smul.u32 %s19, 120
          %v655 = vlaneseq
          %v656 = vand.u32 %v655, 127
          %v657 = vstv %s654
          %v658 = vadd.s32 %v657, %v656
          %vm659 = vcmp.lt.s32.totalorder %v658, 320
          %v660 = vsel %vm659, 1, 0
          %vm661 = vcmp.eq.s32.totalorder %v660, 1
          %v662 = vsel %vm661, %v653, -1e+30
          %v663 = vsel %vm646, %v662, -inf
          %664 = vmax.xlane.f32.xlu0 %v663
          %v665 = vpop.xlane.xlu0 %664
          %v666 = vld [vmem:[#allocation4] sm:$0xff]
          %v667 = vmax.f32 %v666, %v665
          %v668 = vld [vmem:[#allocation5] sm:$0xff]
          %v669 = vsub.f32 %v666, %v667
          %v670 = vmul.f32 %v669, 1.442695
          %v671 = vpow.pop %v670
          %v672 = vmul.f32 %v668, %v671
          %674 = vset.pattern.permute.xlu0 0
          %675 = vperm.xlu0 %674, %v667
          %v676 = vpop.permute.xlu0 %675
          %v678 = vsub.f32 %v662, %v676
          %v679 = vmul.f32 %v678, 1.442695
          %v680 = vpow.pop %v679
          %v681 = vsel %vm646, %v680, 0.0
          %682 = vadd.xlane.f32.xlu0 %v681
          %v683 = vpop.xlane.xlu0 %682
          %v684 = vadd.f32 %v672, %v683
          %vm685 = vcmask 7168
          %686 = vst.msk [vmem:[#allocation5] sm:$0xff] %vm685, %v684
          %687 = vst.msk [vmem:[#allocation4] sm:$0xff] %vm685, %v667
        $region100: #{tpu_custom_call.1} parent=79 // pred_fallthru
          _
        %p688 = pnand %p399, %p648
        %p689 = pneg %p688
        // Predicated region
        $region101: #{tpu_custom_call.1} parent=79 // pred_check
          _
        $region102: #{tpu_custom_call.1} parent=79 // pred_check_branch
          %691 = sbr.rel (%p688) target = $region104
        $region103: #{tpu_custom_call.1} parent=79 // pred_region
          %v692 = vld [vmem:[#allocation2] sm:$0xff]
          %v693 = vmul.f32 %v692, 100.0
          %v694 = vld [vmem:[#allocation6] sm:$0xff]
          %v695 = vmul.f32 %v694, 100.0
          %vm696 = vcmask 7168
          %697 = vst.msk [vmem:[#allocation6] sm:$0xff] %vm696, %v695
          %vm698 = vcmask 64512
          %v699 = vsel %vm698, %v693, -inf
          %700 = vmax.xlane.f32.xlu0 %v699
          %v701 = vpop.xlane.xlu0 %700
          %v702 = vld [vmem:[#allocation4] sm:$0xff]
          %v703 = vmax.f32 %v702, %v701
          %v704 = vld [vmem:[#allocation5] sm:$0xff]
          %v705 = vsub.f32 %v702, %v703
          %v706 = vmul.f32 %v705, 1.442695
          %v707 = vpow.pop %v706
          %v708 = vmul.f32 %v704, %v707
          %710 = vset.pattern.permute.xlu0 0
          %711 = vperm.xlu0 %710, %v703
          %v712 = vpop.permute.xlu0 %711
          %v714 = vsub.f32 %v693, %v712
          %v715 = vmul.f32 %v714, 1.442695
          %v716 = vpow.pop %v715
          %v717 = vsel %vm698, %v716, 0.0
          %718 = vadd.xlane.f32.xlu0 %v717
          %v719 = vpop.xlane.xlu0 %718
          %v720 = vadd.f32 %v708, %v719
          %721 = vst.msk [vmem:[#allocation5] sm:$0xff] %vm696, %v720
          %722 = vst.msk [vmem:[#allocation4] sm:$0xff] %vm696, %v703
          %v723 = vrot.slane %v699, 4
          %v724 = vmax.f32 %v699, %v723
          %v725 = vrot.slane %v724, 2
          %v726 = vmax.f32 %v724, %v725
          %v727 = vrot.slane %v726, 1
          %v728 = vmax.f32 %v726, %v727
          %v729 = vsub.f32 %v693, %v728
          %v730 = vmul.f32 %v729, 1.442695
          %v731 = vpow.pop %v730
          %v732 = vsel %vm698, %v731, 0.0
          %v733 = vrot.slane %v732, 4
          %v734 = vadd.f32 %v732, %v733
          %v735 = vrot.slane %v734, 2
          %v736 = vadd.f32 %v734, %v735
          %v737 = vrot.slane %v736, 1
          %v738 = vadd.f32 %v736, %v737
          %v739 = vlog2.pop %v738
          %v740 = vmul.f32 %v739, 0.6931472
          %v741 = vadd.f32 %v728, %v740
          %v742 = vsel %vm696, %v695, 0.0
          %v743 = vrot.slane %v742, 4
          %v744 = vadd.f32 %v742, %v743
          %v745 = vrot.slane %v744, 2
          %v746 = vadd.f32 %v744, %v745
          %v747 = vrot.slane %v746, 1
          %v748 = vadd.f32 %v746, %v747
          %v749 = vsel %vm698, %v741, 0.0
          %750 = vadd.xlane.f32.xlu0 %v749
          %v751 = vpop.xlane.xlu0 %750
          %v752 = vsub.f32 %v748, %v751
          %v753 = vsub.f32 0.0, %v752
          %v754 = vrcp.pop 8.0
          %v755 = vmul.f32 %v753, %v754
          %vm756 = vcmask 0
          %757 = vst.msk [vmem:[#allocation7] sm:$0x1] %vm756, %v755
        $region104: #{tpu_custom_call.1} parent=79 // pred_fallthru
          _
        %p758 = scmp.eq.s32.totalorder %s19, 2
        %p759 = pnand %p758, %p648
        %p760 = pneg %p759
        // Predicated region
        $region105: #{tpu_custom_call.1} parent=79 // pred_check
          _
        $region106: #{tpu_custom_call.1} parent=79 // pred_check_branch
          %762 = sbr.rel (%p759) target = $region108
        $region107: #{tpu_custom_call.1} parent=79 // pred_region
          %v763 = vld [vmem:[#allocation4] sm:$0xff]
          %v764 = vld [vmem:[#allocation5] sm:$0xff]
          %v765 = vlog2.pop %v764
          %v766 = vmul.f32 %v765, 0.6931472
          %v767 = vadd.f32 %v763, %v766
          %v768 = vld [vmem:[#allocation6] sm:$0xff]
          %v769 = vsub.f32 %v768, %v767
          %vm770 = vcmask 7168
          %v771 = vsel %vm770, %v769, 0.0
          %v772 = vrot.slane %v771, 4
          %v773 = vadd.f32 %v771, %v772
          %v774 = vrot.slane %v773, 2
          %v775 = vadd.f32 %v773, %v774
          %v776 = vrot.slane %v775, 1
          %v777 = vadd.f32 %v775, %v776
          %v778 = vsub.f32 0.0, %v777
          %v779 = vrcp.pop 8.0
          %v780 = vmul.f32 %v778, %v779
          %v781 = vld [vmem:[#allocation7] sm:$0x1]
          %v782 = vadd.f32 %v780, %v781
          %vm783 = vcmask 0
          %784 = vst.msk [vmem:[#allocation9] sm:$0x1] %vm783, %v782
        $region108: #{tpu_custom_call.1} parent=79 // pred_fallthru
          _
        // Predicated region
        $region109: #{tpu_custom_call.1} parent=79 // pred_check
          %p785 = pneg %p120
        $region110: #{tpu_custom_call.1} parent=79 // pred_check_branch
          %787 = sbr.rel (%p785) target = $region112
        $region111: #{tpu_custom_call.1} parent=79 // pred_region
          %s789 = ssub.s32 16, 16
          %790 = vsyncadd [#allocation10], %s789
          %s792 = sshll.u32 [#allocation9], 4
          %s793 = int_to_ptr.vmem [resolvable:$true] %s792
          %795 = dma.vmem_to_hbm [thread:$0]  %s793, 16, %s3, [#allocation10]
        $region112: #{tpu_custom_call.1} parent=79 // pred_fallthru
          _
        // Predicated region
        $region113: #{tpu_custom_call.1} parent=79 // pred_check
          %p796 = pneg %p120
        $region114: #{tpu_custom_call.1} parent=79 // pred_check_branch
          %798 = sbr.rel (%p796) target = $region116
        $region115: #{tpu_custom_call.1} parent=79 // pred_region
          %799 = dma.done [#allocation10], 16
        $region116: #{tpu_custom_call.1} parent=79 // pred_fallthru
          _
      $region80: #{tpu_custom_call.1} parent=5 // pred_fallthru
        _
      %p800 = scmp.le.s32.totalorder 2, %s10
      // Predicated region
      $region117: #{tpu_custom_call.1} parent=5 // pred_check
        %p801 = pneg %p800
      $region118: #{tpu_custom_call.1} parent=5 // pred_check_branch
        %803 = sbr.rel (%p801) target = $region120
      $region119: #{tpu_custom_call.1} parent=5 // pred_region
        %s804 = ssub.s32 %s10, 2
      $region120: #{tpu_custom_call.1} parent=5 // pred_fallthru
        _
    $region6: #{tpu_custom_call.1} parent=1 // loop_footer
      %s14 = sadd.s32 1, %s10
    $region7: #{tpu_custom_call.1} parent=1 // loop_footer_branch
      %9 = sbr.rel target = $region3
    $region8: #{tpu_custom_call.1} parent=1 // loop_exit
      _
    %805 = vsyncpa [#allocation10], 1
    %s806 = scalar_lea.sflag [#allocation10], 1
    %807 = vsyncpa %s806, 1

</llo_original>
